<compile_context>
chip_gen: v6e
topology: v6e:2x2x1
jax: 0.10.0
libtpu: 0.0.40
codegen_flags: <defaults>
</compile_context>

<pallas_src>
import jax
import jax.numpy as jnp
from jax.experimental import pallas as pl
from jax.experimental.pallas import tpu as pltpu


def _round_up(n, m):
    return ((n + m - 1) // m) * m


def _admm_lagrangian_kernel(pf_ref, xt_ref, wt_ref, u_ref, qc_ref, qw_ref, l_ref):
    """Fused batched ADMM augmented-Lagrangian evaluation.

    pf_ref : (1, 1)     SMEM f32   penalty factor
    xt_ref : (Dpa, Bp)  VMEM bf16  [x | 1 | 0]^T, batch on the lane axis
    wt_ref : (Lp, Dpa)  VMEM bf16  fused [At | -bc ; Wt | 0]^T (bias folded)
    u_ref  : (Lp, 1)    VMEM f32   dual u on constraint rows, 0 elsewhere
    qc_ref : (Lp, 1)    VMEM f32   0.5 on constraint rows, 0 elsewhere
    qw_ref : (Lp, 1)    VMEM f32   0.5 on objective rows, 0 elsewhere
    l_ref  : (1, Bp)    VMEM f32   lane-dense per-batch-row L
    """
    pf = pf_ref[0, 0]

    # Single MXU push, f32 accumulation.  The bias fold makes constraint rows
    # of yT already equal to C = x@At - bc and objective rows equal to x@Wt;
    # pad rows/columns are all-zero.
    yT = jnp.dot(wt_ref[...], xt_ref[...], preferred_element_type=jnp.float32)

    # Per-row quadratic coefficient: pf/2 (constraint) | 1/2 (objective) | 0 (pad).
    q = pf * qc_ref[...] + qw_ref[...]

    # u*y + q*y^2, factored to save one VPU multiply; (Lp,1) broadcasts across lanes.
    t = yT * (u_ref[...] + q * yT)

    # Sublane (XLU) reduce -> lane-dense (1, Bp) batch of Lagrangian values.
    l_ref[...] = jnp.sum(t, axis=0, keepdims=True)


def prepare_admm_model(At, bc, Wt, weight_dtype=jnp.bfloat16):
    """Iteration-invariant packing: run ONCE per ADMM solve (hoisted out of the
    per-iteration jitted path)."""
    At = jnp.asarray(At, jnp.float32)               # (D, M) constraint weights^T
    Wt = jnp.asarray(Wt, jnp.float32)               # (D, K) objective weights^T
    bc = jnp.asarray(bc, jnp.float32).reshape(-1)   # (M,)  constraint offsets
    D, M = At.shape
    K = Wt.shape[1]

    Dpa = _round_up(D + 1, 128)     # +1 lane for the bias (bc) column
    Lp = _round_up(M + K, 16)       # sublane tile (bf16 packs 16 rows / vreg)

    # Fused transposed weight: row l < M is constraint l = [At[:,l] | -bc[l] | 0],
    # row M <= l < M+K is objective (l-M) = [Wt[:,l-M] | 0 | 0], pad rows = 0.
    wT = jnp.zeros((Lp, Dpa), jnp.float32)
    wT = wT.at[:M, :D].set(At.T)
    wT = wT.at[:M, D].set(-bc)
    wT = wT.at[M:M + K, :D].set(Wt.T)
    wT = wT.astype(weight_dtype)

    # Quadratic-coefficient masks with the 1/2 pre-folded (kernel: q = pf*qc + qw).
    qc = jnp.zeros((Lp, 1), jnp.float32).at[:M, 0].set(0.5)
    qw = jnp.zeros((Lp, 1), jnp.float32).at[M:M + K, 0].set(0.5)

    return {"wT": wT, "qc": qc, "qw": qw,
            "dim": D, "n_constraints": M, "n_objective": K}


@jax.jit
def admm_lagrangian(wT, qc, qw, x, u, penalty_factor):
    """Per-iteration path: only x, u, pf change; wT/qc/qw come from
    prepare_admm_model().  x: (B, D) batch -> returns (B,) Lagrangian values."""
    x = jnp.asarray(x, jnp.float32)
    u = jnp.asarray(u, jnp.float32).reshape(-1)
    B, D = x.shape
    M = u.shape[0]
    Lp, Dpa = wT.shape
    Bp = _round_up(B, 128)          # batch sits on the lane axis of the output

    # [x | 1]^T, bf16, padded; pad batch columns stay all-zero -> their L is 0.
    xt = jnp.zeros((Dpa, Bp), wT.dtype)
    xt = xt.at[:D, :B].set(x.T.astype(wT.dtype))
    xt = xt.at[D, :B].set(jnp.ones((B,), wT.dtype))

    up = jnp.zeros((Lp, 1), jnp.float32).at[:M, 0].set(u)
    pf = jnp.asarray(penalty_factor, jnp.float32).reshape(1, 1)

    smem = pl.BlockSpec(memory_space=pltpu.MemorySpace.SMEM)
    vmem = pl.BlockSpec(memory_space=pltpu.MemorySpace.VMEM)

    L = pl.pallas_call(
        _admm_lagrangian_kernel,
        out_shape=jax.ShapeDtypeStruct((1, Bp), jnp.float32),
        in_specs=[smem, vmem, vmem, vmem, vmem, vmem],
        out_specs=vmem,
        cost_estimate=pl.CostEstimate(
            flops=2 * Lp * Dpa * Bp + 4 * Lp * Bp,
            transcendentals=0,
            bytes_accessed=(wT.size * wT.dtype.itemsize
                            + xt.size * xt.dtype.itemsize
                            + 4 * (3 * Lp + Bp) + 4),
        ),
    )(pf, xt, wT, up, qc, qw)
    return L[0, :B]


def unconstrained_model_forward(params, x, u=None, penalty_factor=1.0):
    """Module-equivalent forward (single input, scalar L), matching torch:
    on the first call u defaults to zeros_like(C)."""
    x = jnp.asarray(x, jnp.float32).reshape(1, -1)
    if u is None:                                   # torch: self.u = zeros_like(C)
        u = jnp.zeros((params["n_constraints"],), jnp.float32)
    L = admm_lagrangian(params["wT"], params["qc"], params["qw"],
                        x, u, penalty_factor)
    return L[0]


def _reference_forward(x, At, bc, Wt, u, pf, mxu_dtype=jnp.bfloat16):
    """Pure-JAX reference matching the kernel numerics (bf16 MXU inputs, f32 acc)."""
    rnd = lambda a: jnp.asarray(a, jnp.float32).astype(mxu_dtype).astype(jnp.float32)
    x = rnd(x).reshape(1, -1)
    c = (x @ rnd(At)).reshape(-1) - rnd(bc).reshape(-1)
    r = 0.5 * jnp.sum((x @ rnd(Wt)) ** 2)
    u = jnp.asarray(u, jnp.float32).reshape(-1)
    return r + jnp.dot(u, c) + pf * jnp.sum(c * c) / 2.0


if __name__ == "__main__":
    key = jax.random.PRNGKey(0)
    D, M, K, B = 32, 16, 8, 8

    k1, k2, k3, k4, k5, k6 = jax.random.split(key, 6)
    At = jax.random.normal(k1, (D, M), jnp.float32) * 0.1   # constraint weights^T
    bc = jax.random.normal(k2, (M,), jnp.float32)           # constraint offsets
    Wt = jax.random.normal(k3, (D, K), jnp.float32) * 0.1   # objective weights^T
    x1 = jax.random.normal(k4, (1, D), jnp.float32)         # single input (torch path)
    xb = jax.random.normal(k5, (B, D), jnp.float32)         # batched evaluation slab
    u1 = jax.random.normal(k6, (M,), jnp.float32)           # later-iteration dual

    # Once per ADMM solve: pack/pad/fuse the invariant operands.
    params = prepare_admm_model(At, bc, Wt)

    # First forward: u defaults to zeros_like(C), exactly as the torch module.
    pf0 = 0.5
    L0 = jax.block_until_ready(
        unconstrained_model_forward(params, x1, penalty_factor=pf0))
    ref0 = _reference_forward(x1, At, bc, Wt, jnp.zeros((M,), jnp.float32), pf0)

    # Later ADMM iteration: new dual u and a different penalty factor.  Only
    # data changes -- no retrace, no re-packing of the fused weight.
    pf1 = 2.0
    L1 = jax.block_until_ready(
        unconstrained_model_forward(params, x1, u1, penalty_factor=pf1))
    ref1 = _reference_forward(x1, At, bc, Wt, u1, pf1)

    # Batched evaluation: B candidate x rows share one weight-resident kernel
    # call; batch on the MXU/lane axis, lane-dense (1, Bp) output.
    Lb = jax.block_until_ready(
        admm_lagrangian(params["wT"], params["qc"], params["qw"], xb, u1, pf1))
    refb = jnp.stack([_reference_forward(xb[i], At, bc, Wt, u1, pf1)
                      for i in range(B)])

    assert jnp.allclose(L0, ref0, rtol=1e-4, atol=1e-4), (L0, ref0)
    assert jnp.allclose(L1, ref1, rtol=1e-4, atol=1e-4), (L1, ref1)
    assert jnp.allclose(Lb, refb, rtol=1e-4, atol=1e-4), (Lb, refb)
    print("KERNEL_OK")
</pallas_src>

<mosaic_0001>
module attributes {stable_mosaic.version = 11 : i64} {
  func.func @_admm_lagrangian_kernel(%arg0: memref<1x1xf32, #tpu.memory_space<smem>>, %arg1: memref<128x128xbf16, #tpu.memory_space<vmem>>, %arg2: memref<32x128xbf16, #tpu.memory_space<vmem>>, %arg3: memref<32x1xf32, #tpu.memory_space<vmem>>, %arg4: memref<32x1xf32, #tpu.memory_space<vmem>>, %arg5: memref<32x1xf32, #tpu.memory_space<vmem>>, %arg6: memref<1x128xf32, #tpu.memory_space<vmem>>) attributes {dimension_semantics = [], scalar_prefetch = 0 : i64, scratch_operands = 0 : i64, tpu.core_type = #tpu.core_type<tc>} {
    %c0 = arith.constant 0 : index
    %c0_0 = arith.constant 0 : index
    %0 = memref.load %arg0[%c0, %c0_0] : memref<1x1xf32, #tpu.memory_space<smem>>
    %c0_1 = arith.constant 0 : index
    %c0_2 = arith.constant 0 : index
    %1 = vector.load %arg2[%c0_1, %c0_2] : memref<32x128xbf16, #tpu.memory_space<vmem>>, vector<32x128xbf16>
    %c0_3 = arith.constant 0 : index
    %c0_4 = arith.constant 0 : index
    %2 = vector.load %arg1[%c0_3, %c0_4] : memref<128x128xbf16, #tpu.memory_space<vmem>>, vector<128x128xbf16>
    %cst = arith.constant dense<0.000000e+00> : vector<32x128xf32>
    %3 = tpu.matmul %1, %2, %cst {dimension_numbers = #tpu.dot_dimension_numbers<[1], [0], [0], [1], [0, 0, 1, 1], [], []>} : vector<32x128xbf16>, vector<128x128xbf16>, vector<32x128xf32> -> vector<32x128xf32>
    %c0_5 = arith.constant 0 : index
    %c0_6 = arith.constant 0 : index
    %4 = vector.load %arg4[%c0_5, %c0_6] : memref<32x1xf32, #tpu.memory_space<vmem>>, vector<32x1xf32>
    %5 = vector.broadcast %0 : f32 to vector<32x1xf32>
    %6 = arith.mulf %5, %4 : vector<32x1xf32>
    %c0_7 = arith.constant 0 : index
    %c0_8 = arith.constant 0 : index
    %7 = vector.load %arg5[%c0_7, %c0_8] : memref<32x1xf32, #tpu.memory_space<vmem>>, vector<32x1xf32>
    %8 = arith.addf %6, %7 : vector<32x1xf32>
    %c0_9 = arith.constant 0 : index
    %c0_10 = arith.constant 0 : index
    %9 = vector.load %arg3[%c0_9, %c0_10] : memref<32x1xf32, #tpu.memory_space<vmem>>, vector<32x1xf32>
    %10 = vector.broadcast %8 : vector<32x1xf32> to vector<32x128xf32>
    %11 = arith.mulf %10, %3 : vector<32x128xf32>
    %12 = vector.broadcast %9 : vector<32x1xf32> to vector<32x128xf32>
    %13 = arith.addf %12, %11 : vector<32x128xf32>
    %14 = arith.mulf %3, %13 : vector<32x128xf32>
    %cst_11 = arith.constant dense<0.000000e+00> : vector<128xf32>
    %15 = vector.multi_reduction <add>, %14, %cst_11 [0] : vector<32x128xf32> to vector<128xf32>
    %16 = vector.shape_cast %15 : vector<128xf32> to vector<1x128xf32>
    %c0_12 = arith.constant 0 : index
    %c0_13 = arith.constant 0 : index
    %17 = vector.load %arg6[%c0_12, %c0_13] : memref<1x128xf32, #tpu.memory_space<vmem>>, vector<1x128xf32>
    tpu.vector_store %arg6[%c0_12, %c0_13], %16 {strides = array<i32>} : memref<1x128xf32, #tpu.memory_space<vmem>>, vector<1x128xf32>,
    return
  }
}

</mosaic_0001>

<llo_original>
// kernel: admm_lagrangian.1
$region0: #{admm_lagrangian.1}
  #allocation0 [shape = 'u32[]', space=smem, size = 0x4, offset = 0x4, fixed_abs, tag = 'smem constant byte address 0x4 - core index']
  #allocation1 [shape = 'u32[144,128]{1,0:T(1,128)}', space=vmem, size = 0x12000, scoped, tag = 'internal scratch']
  #allocation2 [shape = 'f32[1,1]{1,0:T(1,128)S(6)}', space=smem, size = 0x200, scoped, tag = 'scoped memory for admm_lagrangian.1']
  %s0 = inlined_call_operand.<no memory space> [shape: f32[1,1], index: 0, kind: input, shape index: {}]
  %s1 = inlined_call_operand.vmem [shape: bf16[128,128], index: 1, kind: input, shape index: {}]
  %s2 = inlined_call_operand.vmem [shape: bf16[32,128], index: 2, kind: input, shape index: {}]
  %s3 = inlined_call_operand.vmem [shape: f32[32,1], index: 3, kind: input, shape index: {}]
  %s4 = inlined_call_operand.vmem [shape: f32[32,1], index: 4, kind: input, shape index: {}]
  %s5 = inlined_call_operand.vmem [shape: f32[32,1], index: 5, kind: input, shape index: {}]
  %s6 = inlined_call_operand.hbm [shape: f32[1,128], index: 6, kind: output, shape index: {}]
  %s7 = sld [smem:[#allocation0]]
  $region34: #{admm_lagrangian.1} parent=0
    _
  %s9 = ssub.s32 1, %s7
  %s10 = scalar_select 0, %s9, %s7
  %11 = sst [smem:[#allocation2]] %s0
  $region1: #{admm_lagrangian.1} parent=0
    #allocation3 [shape = 'u8[512]{0}', space=vmem, size = 0x400, scoped, tag = 'output window, operand 0, single buffered']
    #allocation4 [shape = 's32[1]{0}', space=sflag, size = 0x4, scoped, tag = 'scoped memory for admm_lagrangian.1']
    %12 = vsyncpa [#allocation4], 0
    // Predicated region
    $region2: #{admm_lagrangian.1} parent=1 // pred_check
      _
    $region3: #{admm_lagrangian.1} parent=1 // pred_check_branch
      %14 = sbr.rel (0) target = $region5
    $region4: #{admm_lagrangian.1} parent=1 // pred_region
      _
    $region5: #{admm_lagrangian.1} parent=1 // pred_fallthru
      _
    // Predicated region
    $region6: #{admm_lagrangian.1} parent=1 // pred_check
      _
    $region7: #{admm_lagrangian.1} parent=1 // pred_check_branch
      %16 = sbr.rel (0) target = $region9
    $region8: #{admm_lagrangian.1} parent=1 // pred_region
      _
    $region9: #{admm_lagrangian.1} parent=1 // pred_fallthru
      _
    // Predicated region
    $region10: #{admm_lagrangian.1} parent=1 // pred_check
      _
    $region11: #{admm_lagrangian.1} parent=1 // pred_check_branch
      %18 = sbr.rel (0) target = $region13
    $region12: #{admm_lagrangian.1} parent=1 // pred_region
      _
    $region13: #{admm_lagrangian.1} parent=1 // pred_fallthru
      _
    // Predicated region
    $region14: #{admm_lagrangian.1} parent=1 // pred_check
      _
    $region15: #{admm_lagrangian.1} parent=1 // pred_check_branch
      %20 = sbr.rel (0) target = $region17
    $region16: #{admm_lagrangian.1} parent=1 // pred_region
      _
    $region17: #{admm_lagrangian.1} parent=1 // pred_fallthru
      _
    // Predicated region
    $region18: #{admm_lagrangian.1} parent=1 // pred_check
      _
    $region19: #{admm_lagrangian.1} parent=1 // pred_check_branch
      %22 = sbr.rel (0) target = $region21
    $region20: #{admm_lagrangian.1} parent=1 // pred_region
      _
    $region21: #{admm_lagrangian.1} parent=1 // pred_fallthru
      _
    // Predicated region
    $region22: #{admm_lagrangian.1} parent=1 // pred_check
      _
    $region23: #{admm_lagrangian.1} parent=1 // pred_check_branch
      %24 = sbr.rel (0) target = $region25
    $region24: #{admm_lagrangian.1} parent=1 // pred_region
      _
    $region25: #{admm_lagrangian.1} parent=1 // pred_fallthru
      _
    %s26 = sld [smem:[#allocation2]]
    %v27 = vld [vmem:[%s2] sm:$0xf]
    %v28 = vld [vmem:[%s2 + $0x4] sm:$0xf]
    %v29 = vld [vmem:[%s2 + $0x8] sm:$0xf]
    %v30 = vld [vmem:[%s2 + $0xc] sm:$0xf]
    %v31 = vld [vmem:[%s1] sm:$0xf]
    %v32 = vld [vmem:[%s1 + $0x4] sm:$0xf]
    %v33 = vld [vmem:[%s1 + $0x8] sm:$0xf]
    %v34 = vld [vmem:[%s1 + $0xc] sm:$0xf]
    %v35 = vld [vmem:[%s1 + $0x10] sm:$0xf]
    %v36 = vld [vmem:[%s1 + $0x14] sm:$0xf]
    %v37 = vld [vmem:[%s1 + $0x18] sm:$0xf]
    %v38 = vld [vmem:[%s1 + $0x1c] sm:$0xf]
    %v39 = vld [vmem:[%s1 + $0x20] sm:$0xf]
    %v40 = vld [vmem:[%s1 + $0x24] sm:$0xf]
    %v41 = vld [vmem:[%s1 + $0x28] sm:$0xf]
    %v42 = vld [vmem:[%s1 + $0x2c] sm:$0xf]
    %v43 = vld [vmem:[%s1 + $0x30] sm:$0xf]
    %v44 = vld [vmem:[%s1 + $0x34] sm:$0xf]
    %v45 = vld [vmem:[%s1 + $0x38] sm:$0xf]
    %v46 = vld [vmem:[%s1 + $0x3c] sm:$0xf]
    %v51 = vunpack.c.l.b16 %v27
    %v52 = vunpack.c.l.b16 %v28
    %v53 = vunpack.c.l.b16 %v29
    %v54 = vunpack.c.l.b16 %v30
    %v55 = vpack.c.b16 %v52, %v51
    %v56 = vpack.c.b16 %v54, %v53
    %v75 = vunpack.c.l.b16 %v31
    %v76 = vunpack.c.l.b16 %v32
    %v77 = vunpack.c.l.b16 %v33
    %v78 = vunpack.c.l.b16 %v34
    %v79 = vunpack.c.l.b16 %v35
    %v80 = vunpack.c.l.b16 %v36
    %v81 = vunpack.c.l.b16 %v37
    %v82 = vunpack.c.l.b16 %v38
    %v83 = vunpack.c.l.b16 %v39
    %v84 = vunpack.c.l.b16 %v40
    %v85 = vunpack.c.l.b16 %v41
    %v86 = vunpack.c.l.b16 %v42
    %v87 = vunpack.c.l.b16 %v43
    %v88 = vunpack.c.l.b16 %v44
    %v89 = vunpack.c.l.b16 %v45
    %v90 = vunpack.c.l.b16 %v46
    %v91 = vpack.c.b16 %v76, %v75
    %v92 = vpack.c.b16 %v78, %v77
    %v93 = vpack.c.b16 %v80, %v79
    %v94 = vpack.c.b16 %v82, %v81
    %v95 = vpack.c.b16 %v84, %v83
    %v96 = vpack.c.b16 %v86, %v85
    %v97 = vpack.c.b16 %v88, %v87
    %v98 = vpack.c.b16 %v90, %v89
    %107 = vmatprep.subr.bf16.mxu0 0
    %108 = vmatpush1.bf16.msra.mxu0 %v98
    %109 = vmatprep.subr.bf16.mxu0 0
    %110 = vmatpush1.bf16.msra.mxu0 %v97
    %111 = vmatprep.subr.bf16.mxu0 0
    %112 = vmatpush1.bf16.msra.mxu0 %v96
    %113 = vmatprep.subr.bf16.mxu0 0
    %114 = vmatpush1.bf16.msra.mxu0 %v95
    %115 = vmatprep.subr.bf16.mxu0 0
    %116 = vmatpush1.bf16.msra.mxu0 %v94
    %117 = vmatprep.subr.bf16.mxu0 0
    %118 = vmatpush1.bf16.msra.mxu0 %v93
    %119 = vmatprep.subr.bf16.mxu0 0
    %120 = vmatpush1.bf16.msra.mxu0 %v92
    %121 = vmatprep.subr.bf16.mxu0 0
    %122 = vmatpush1.bf16.msra.mxu0 %v91
    %123 = vmatprep.subr.bf16.mxu0 0
    %124 = vmatpush2.bf16.msra.mxu0 0
    %125 = vmatprep.subr.bf16.mxu0 0
    %126 = vmatpush2.bf16.msra.mxu0 0
    %127 = vmatprep.subr.bf16.mxu0 0
    %128 = vmatpush2.bf16.msra.mxu0 0
    %129 = vmatprep.subr.bf16.mxu0 0
    %130 = vmatpush2.bf16.msra.mxu0 0
    %131 = vmatprep.subr.bf16.mxu0 0
    %132 = vmatpush2.bf16.msra.mxu0 0
    %133 = vmatprep.subr.bf16.mxu0 0
    %134 = vmatpush2.bf16.msra.mxu0 0
    %135 = vmatprep.subr.bf16.mxu0 0
    %136 = vmatpush2.bf16.msra.mxu0 0
    %137 = vmatprep.subr.bf16.mxu0 0
    %138 = vmatpush2.bf16.msra.mxu0 0
    %139 = vmatprep.mubr.bf16.mxu0 0
    %140 = vmatmul.mubr.bf16.gmra.mxu0 %v55
    %v141 = vpop.f32.mrf.mxu0
    %v142 = vadd.f32 0.0, %v141
    %v143 = vpop.f32.mrf.mxu0
    %v144 = vpop.f32.mrf.mxu0
    %v145 = vadd.f32 0.0, %v144
    %v146 = vpop.f32.mrf.mxu0
    %147 = vmatprep.mubr.bf16.mxu0 0
    %148 = vmatmul.mubr.bf16.gmra.mxu0 %v56
    %v149 = vpop.f32.mrf.mxu0
    %v150 = vadd.f32 0.0, %v149
    %v151 = vpop.f32.mrf.mxu0
    %v152 = vpop.f32.mrf.mxu0
    %v153 = vadd.f32 0.0, %v152
    %v154 = vpop.f32.mrf.mxu0
    %155 = vdwg.mxu0
    %v156 = vld [vmem:[%s4] sm:$0xff]
    %v157 = vld [vmem:[%s4 + $0x8] sm:$0xff]
    %v158 = vld [vmem:[%s4 + $0x10] sm:$0xff]
    %v159 = vld [vmem:[%s4 + $0x18] sm:$0xff]
    %v160 = vstv %s26
    %v161 = vmul.f32 %v160, %v156
    %v162 = vmul.f32 %v160, %v157
    %v163 = vmul.f32 %v160, %v158
    %v164 = vmul.f32 %v160, %v159
    %v165 = vld [vmem:[%s5] sm:$0xff]
    %v166 = vld [vmem:[%s5 + $0x8] sm:$0xff]
    %v167 = vld [vmem:[%s5 + $0x10] sm:$0xff]
    %v168 = vld [vmem:[%s5 + $0x18] sm:$0xff]
    %v169 = vadd.f32 %v161, %v165
    %v170 = vadd.f32 %v162, %v166
    %v171 = vadd.f32 %v163, %v167
    %v172 = vadd.f32 %v164, %v168
    %v173 = vld [vmem:[%s3] sm:$0xff]
    %v174 = vld [vmem:[%s3 + $0x8] sm:$0xff]
    %v175 = vld [vmem:[%s3 + $0x10] sm:$0xff]
    %v176 = vld [vmem:[%s3 + $0x18] sm:$0xff]
    %178 = vset.pattern.permute.xlu0 0
    %179 = vperm.xlu0 %178, %v169
    %v180 = vpop.permute.xlu0 %179
    %183 = vset.pattern.permute.xlu0 0
    %184 = vperm.xlu0 %183, %v170
    %v185 = vpop.permute.xlu0 %184
    %188 = vset.pattern.permute.xlu0 0
    %189 = vperm.xlu0 %188, %v171
    %v190 = vpop.permute.xlu0 %189
    %193 = vset.pattern.permute.xlu0 0
    %194 = vperm.xlu0 %193, %v172
    %v195 = vpop.permute.xlu0 %194
    %v197 = vmul.f32 %v180, %v142
    %v198 = vmul.f32 %v185, %v145
    %v199 = vmul.f32 %v190, %v150
    %v200 = vmul.f32 %v195, %v153
    %202 = vset.pattern.permute.xlu0 0
    %203 = vperm.xlu0 %202, %v173
    %v204 = vpop.permute.xlu0 %203
    %207 = vset.pattern.permute.xlu0 0
    %208 = vperm.xlu0 %207, %v174
    %v209 = vpop.permute.xlu0 %208
    %212 = vset.pattern.permute.xlu0 0
    %213 = vperm.xlu0 %212, %v175
    %v214 = vpop.permute.xlu0 %213
    %217 = vset.pattern.permute.xlu0 0
    %218 = vperm.xlu0 %217, %v176
    %v219 = vpop.permute.xlu0 %218
    %v221 = vadd.f32 %v204, %v197
    %v222 = vadd.f32 %v209, %v198
    %v223 = vadd.f32 %v214, %v199
    %v224 = vadd.f32 %v219, %v200
    %v225 = vmul.f32 %v142, %v221
    %v226 = vmul.f32 %v145, %v222
    %v227 = vmul.f32 %v150, %v223
    %v228 = vmul.f32 %v153, %v224
    %v229 = vadd.f32 %v225, %v226
    %v230 = vadd.f32 %v229, %v227
    %v231 = vadd.f32 %v230, %v228
    %v232 = vrot.slane %v231, 4
    %v233 = vadd.f32 %v231, %v232
    %v234 = vrot.slane %v233, 2
    %v235 = vadd.f32 %v233, %v234
    %v236 = vrot.slane %v235, 1
    %v237 = vadd.f32 %v235, %v236
    %238 = vst [vmem:[#allocation3] sm:$0x1] %v237
    // Predicated region
    $region26: #{admm_lagrangian.1} parent=1 // pred_check
      _
    $region27: #{admm_lagrangian.1} parent=1 // pred_check_branch
      %240 = sbr.rel (0) target = $region29
    $region28: #{admm_lagrangian.1} parent=1 // pred_region
      %s242 = ssub.s32 16, 16
      %243 = vsyncadd [#allocation4], %s242
      %s245 = sshll.u32 [#allocation3], 4
      %s246 = int_to_ptr.vmem [resolvable:$true] %s245
      %248 = dma.vmem_to_hbm [thread:$0]  %s246, 16, %s6, [#allocation4]
    $region29: #{admm_lagrangian.1} parent=1 // pred_fallthru
      _
    // Predicated region
    $region30: #{admm_lagrangian.1} parent=1 // pred_check
      _
    $region31: #{admm_lagrangian.1} parent=1 // pred_check_branch
      %250 = sbr.rel (0) target = $region33
    $region32: #{admm_lagrangian.1} parent=1 // pred_region
      %251 = dma.done [#allocation4], 16
    $region33: #{admm_lagrangian.1} parent=1 // pred_fallthru
      _
    %252 = vsyncpa [#allocation4], 1

</llo_original>
